<compile_context>
chip_gen: v6e
topology: v6e:2x2x1
jax: 0.10.0
libtpu: 0.0.40
codegen_flags: <defaults>
</compile_context>

<pallas_src>
import functools
import math

import jax
import jax.numpy as jnp
from jax.experimental import pallas as pl
from jax.experimental.pallas import tpu as pltpu

_LANES = 128
_SUBLANES = 8
# Split into >= 2 grid tiles once each half would still hold >= 2048 rows
# (>= 1 MiB of f32), so the per-step overhead stays amortized while both v7x
# TensorCores get work.
_MIN_SPLIT_ROWS = 2048


def _bce_sum_kernel(target, x_ref, out_ref):
    """One tile: lane-dense (8, 128) partial sum of BCE(sigmoid(x), target).

    Uses the logits identity BCE(sigmoid(x), t) = softplus(x) - t*x, the
    numerically stable equivalent of the reference BCELoss(Sigmoid(x), t).
    """
    # bf16/f16 inputs are cast on-chip (v5e has no bf16 VPU/EUP path).
    x = x_ref[...].astype(jnp.float32)
    softplus = jnp.maximum(x, 0.0) + jnp.log1p(jnp.exp(-jnp.abs(x)))
    if target == 0.0:            # trace-time constants -> skip dead VALU work
        loss = softplus
    elif target == 1.0:
        loss = softplus - x
    else:
        loss = softplus - jnp.float32(target) * x

    # Fold (tile_rows, 128) -> (8, 128): layout-preserving sublane-group sum
    # (elementwise vreg adds only).  The final tiny reduction happens in JAX.
    tile_rows = loss.shape[0]
    if tile_rows == _SUBLANES:
        out_ref[...] = loss
    else:
        out_ref[...] = jnp.sum(
            loss.reshape(tile_rows // _SUBLANES, _SUBLANES, _LANES), axis=0)


def _choose_tiling(rows_8, max_tile_rows):
    """Pick (tile_rows, num_tiles): large balanced tiles, >=2 tiles for big inputs."""
    num_tiles = max(1, -(-rows_8 // max_tile_rows))
    if num_tiles == 1 and rows_8 >= 2 * _MIN_SPLIT_ROWS:
        num_tiles = 2                      # let v7x megacore shard the grid axis
    if num_tiles > 1 and num_tiles % 2:
        num_tiles += 1                     # even tile count balances the 2 cores
    tile_rows = -(-rows_8 // num_tiles)
    tile_rows = ((tile_rows + _SUBLANES - 1) // _SUBLANES) * _SUBLANES
    return tile_rows, num_tiles


def _bce_with_logits_mean(scores, target, max_tile_rows):
    """mean over all elements of `scores` of BCE(sigmoid(x), target)."""
    x = scores.reshape(-1)
    if x.dtype not in (jnp.float32, jnp.bfloat16, jnp.float16):
        x = x.astype(jnp.float32)          # keep bf16/f16 as-is: halves HBM reads
    n = x.shape[0]

    rows = pl.cdiv(n, _LANES)
    rows_8 = ((rows + _SUBLANES - 1) // _SUBLANES) * _SUBLANES
    tile_rows, num_tiles = _choose_tiling(rows_8, max_tile_rows)
    padded_rows = tile_rows * num_tiles
    total = padded_rows * _LANES

    if total == n:
        x2d = x.reshape(padded_rows, _LANES)                 # free: no pad copy
    else:
        x2d = jnp.pad(x, (0, total - n)).reshape(padded_rows, _LANES)

    partials = pl.pallas_call(
        functools.partial(_bce_sum_kernel, float(target)),
        out_shape=jax.ShapeDtypeStruct((num_tiles * _SUBLANES, _LANES),
                                       jnp.float32),
        grid=(num_tiles,),
        in_specs=[pl.BlockSpec((tile_rows, _LANES), lambda i: (i, 0))],
        out_specs=pl.BlockSpec((_SUBLANES, _LANES), lambda i: (i, 0)),
        compiler_params=pltpu.CompilerParams(
            dimension_semantics=("parallel",),
            # Footprint: 2 buffers x <=4 MiB input tile + tiny output -> <=~8 MiB,
            # comfortably under the scoped limit on v5e/v6e/v7x.
            vmem_limit_bytes=32 << 20,
        ),
    )(x2d)

    # Every zero-padded element contributes exactly softplus(0) - t*0 = ln 2;
    # subtract that trace-time constant instead of masking inside the kernel.
    pad_correction = math.log(2.0) * (total - n)
    return (jnp.sum(partials) - jnp.float32(pad_correction)) / jnp.float32(n)


def binary_cross_entropy_loss(positive_triplets, negative_triplets,
                              lbl_smooth, num_rel, *, max_tile_rows=8192):
    """Pallas implementation of BinaryCrossEntropyLoss.forward."""
    # Label-smoothing branch, exactly as in the reference forward().
    # TODO(synk): PyTorch BCELoss clamps log() at -100; the stable logits form
    # used here is mathematically identical and only differs for |score| > ~100.
    if lbl_smooth != 0.0:
        pos_target = (1.0 - lbl_smooth) + lbl_smooth / num_rel
        neg_target = lbl_smooth / num_rel
    else:
        pos_target = 1.0
        neg_target = 0.0

    # Independent means over each tensor (as in the reference), so the positive
    # and negative score tensors may have different element counts.
    return (_bce_with_logits_mean(positive_triplets, pos_target, max_tile_rows)
            + _bce_with_logits_mean(negative_triplets, neg_target, max_tile_rows))


def _reference_loss(pos, neg, lbl_smooth, num_rel):
    """Pure-JAX reference mirroring the PyTorch module."""
    if lbl_smooth != 0.0:
        pos_t = (1.0 - lbl_smooth) + lbl_smooth / num_rel
        neg_t = lbl_smooth / num_rel
    else:
        pos_t, neg_t = 1.0, 0.0

    def bce(x, t):
        p = jax.nn.sigmoid(x)
        return jnp.mean(-(t * jnp.log(p) + (1.0 - t) * jnp.log(1.0 - p)))

    return bce(pos, pos_t) + bce(neg, neg_t)


if __name__ == "__main__":
    NUM_REL = 16
    key = jax.random.PRNGKey(0)

    # Two small batch sizes: 200 exercises lane/sublane padding with a single
    # 8x128 tile; 5000 exercises the in-kernel sublane-group fold (40 rows).
    for B in (200, 5000):
        k_pos, k_neg = jax.random.split(jax.random.fold_in(key, B))
        positive = jax.random.normal(k_pos, (B,), dtype=jnp.float32) + 1.0
        negative = jax.random.normal(k_neg, (B,), dtype=jnp.float32) - 1.0

        # Exercise both branches of the reference forward (lbl_smooth != 0 and == 0).
        for lbl_smooth in (0.1, 0.0):
            loss = binary_cross_entropy_loss(positive, negative, lbl_smooth, NUM_REL)
            loss = jax.block_until_ready(loss)
            ref = _reference_loss(positive, negative, lbl_smooth, NUM_REL)
            assert bool(jnp.isfinite(loss)), "loss is not finite"
            assert abs(float(loss) - float(ref)) < 1e-4, (
                B, lbl_smooth, float(loss), float(ref))

    print("KERNEL_OK")
</pallas_src>

<mosaic_0001>
module attributes {stable_mosaic.version = 11 : i64} {
  func.func @_bce_sum_kernel(%arg0: i32, %arg1: memref<8x128xf32, #tpu.memory_space<vmem>>, %arg2: memref<8x128xf32, #tpu.memory_space<vmem>>) attributes {dimension_semantics = [#tpu.dimension_semantics<parallel>], iteration_bounds = array<i64: 1>, scalar_prefetch = 0 : i64, scratch_operands = 0 : i64, tpu.core_type = #tpu.core_type<tc>, window_params = [{transform_indices = @transform_0, window_bounds = array<i64: 8, 128>}, {transform_indices = @transform_1, window_bounds = array<i64: 8, 128>}]} {
    %c0 = arith.constant 0 : index
    %c0_0 = arith.constant 0 : index
    %0 = vector.load %arg1[%c0, %c0_0] : memref<8x128xf32, #tpu.memory_space<vmem>>, vector<8x128xf32>
    %cst = arith.constant 0.000000e+00 : f32
    %1 = vector.broadcast %cst : f32 to vector<8x128xf32>
    %2 = arith.maximumf %0, %1 : vector<8x128xf32>
    %3 = math.absf %0 : vector<8x128xf32>
    %cst_1 = arith.constant 0.000000e+00 : f32
    %4 = vector.broadcast %cst_1 : f32 to vector<8x128xf32>
    %5 = arith.subf %4, %3 : vector<8x128xf32>
    %6 = math.exp %5 : vector<8x128xf32>
    %7 = math.log1p %6 : vector<8x128xf32>
    %8 = arith.addf %2, %7 : vector<8x128xf32>
    %cst_2 = arith.constant 9.062500e-01 : f32
    %9 = vector.broadcast %cst_2 : f32 to vector<8x128xf32>
    %10 = arith.mulf %9, %0 : vector<8x128xf32>
    %11 = arith.subf %8, %10 : vector<8x128xf32>
    %c0_3 = arith.constant 0 : index
    %c0_4 = arith.constant 0 : index
    %12 = vector.load %arg2[%c0_3, %c0_4] : memref<8x128xf32, #tpu.memory_space<vmem>>, vector<8x128xf32>
    tpu.vector_store %arg2[%c0_3, %c0_4], %11 {strides = array<i32>} : memref<8x128xf32, #tpu.memory_space<vmem>>, vector<8x128xf32>,
    return
  }
  func.func @transform_0(%arg0: i32) -> (i32, i32) {
    %c0_i32 = arith.constant 0 : i32
    %c0_i32_0 = arith.constant 0 : i32
    return %arg0, %c0_i32 : i32, i32
  }
  func.func @transform_1(%arg0: i32) -> (i32, i32) {
    %c0_i32 = arith.constant 0 : i32
    %c0_i32_0 = arith.constant 0 : i32
    return %arg0, %c0_i32 : i32, i32
  }
}

</mosaic_0001>

<llo_original>
// kernel: tpu_custom_call.1
$region0: #{tpu_custom_call.1}
  #allocation0 [shape = 'u32[]', space=smem, size = 0x4, offset = 0x4, fixed_abs, tag = 'smem constant byte address 0x4 - core index']
  #allocation1 [shape = 'u32[144,128]{1,0:T(1,128)}', space=vmem, size = 0x12000, scoped, tag = 'internal scratch']
  %s0 = inlined_call_operand.hbm [shape: f32[8,128], index: 0, kind: input, shape index: {}]
  %s1 = inlined_call_operand.hbm [shape: f32[8,128], index: 1, kind: output, shape index: {}]
  %s2 = sld [smem:[#allocation0]]
  $region18: #{tpu_custom_call.1} parent=0
    _
  %s4 = ssub.s32 1, %s2
  %s5 = scalar_select 0, %s4, %s2
  $region1: #{tpu_custom_call.1} parent=0
    #allocation2 [shape = 'u8[4096]{0}', space=vmem, size = 0x1000, scoped, tag = 'input window, operand 0, single buffered']
    #allocation3 [shape = 's32[1]{0}', space=sflag, size = 0x4, scoped, tag = 'scoped memory for tpu_custom_call.1']
    #allocation4 [shape = 's32[1]{0}', space=sflag, size = 0x4, scoped, tag = 'scoped memory for tpu_custom_call.1']
    #allocation5 [shape = 'u8[4096]{0}', space=vmem, size = 0x1000, scoped, tag = 'output window, operand 0, single buffered']
    %6 = vsyncpa [#allocation3], 0
    %7 = vsyncpa [#allocation4], 0
    // Predicated region
    $region2: #{tpu_custom_call.1} parent=1 // pred_check
      _
    $region3: #{tpu_custom_call.1} parent=1 // pred_check_branch
      %9 = sbr.rel (0) target = $region5
    $region4: #{tpu_custom_call.1} parent=1 // pred_region
      %s11 = ssub.s32 128, 128
      %12 = vsyncadd [#allocation3], %s11
      %s14 = sshll.u32 [#allocation2], 4
      %s15 = int_to_ptr.vmem [resolvable:$true] %s14
      %17 = dma.hbm_to_vmem [thread:$0]  %s0, 128, %s15, [#allocation3]
    $region5: #{tpu_custom_call.1} parent=1 // pred_fallthru
      _
    // Predicated region
    $region6: #{tpu_custom_call.1} parent=1 // pred_check
      _
    $region7: #{tpu_custom_call.1} parent=1 // pred_check_branch
      %19 = sbr.rel (0) target = $region9
    $region8: #{tpu_custom_call.1} parent=1 // pred_region
      %20 = dma.done [#allocation3], 128
    $region9: #{tpu_custom_call.1} parent=1 // pred_fallthru
      _
    %v21 = vld [vmem:[#allocation2] sm:$0xff]
    %v22 = vmax.f32 %v21, 0.0
    %v23 = vand.u32 2147483647, %v21
    %v24 = vsub.f32 0.0, %v23
    %v25 = vmul.f32 %v24, 1.442695
    %v26 = vpow.pop %v25
    %v27 = vadd.f32 %v26, 1.0
    %v28 = vlog2.pop %v27
    %v29 = vmul.f32 %v28, 0.6931472
    %v30 = vmul.f32 -0.5, %v26
    %v31 = vadd.f32 %v30, 1.0
    %v32 = vmul.f32 %v31, %v26
    %v33 = vand.u32 2147483647, %v26
    %vm34 = vcmp.lt.f32.partialorder %v33, 0.0004427343
    %v35 = vsel %vm34, %v32, %v29
    %v36 = vadd.f32 %v22, %v35
    %v37 = vmul.f32 %v21, 0.90625
    %v38 = vsub.f32 %v36, %v37
    %39 = vst [vmem:[#allocation5] sm:$0xff] %v38
    // Predicated region
    $region10: #{tpu_custom_call.1} parent=1 // pred_check
      _
    $region11: #{tpu_custom_call.1} parent=1 // pred_check_branch
      %41 = sbr.rel (0) target = $region13
    $region12: #{tpu_custom_call.1} parent=1 // pred_region
      %s43 = ssub.s32 128, 128
      %44 = vsyncadd [#allocation4], %s43
      %s46 = sshll.u32 [#allocation5], 4
      %s47 = int_to_ptr.vmem [resolvable:$true] %s46
      %49 = dma.vmem_to_hbm [thread:$0]  %s47, 128, %s1, [#allocation4]
    $region13: #{tpu_custom_call.1} parent=1 // pred_fallthru
      _
    // Predicated region
    $region14: #{tpu_custom_call.1} parent=1 // pred_check
      _
    $region15: #{tpu_custom_call.1} parent=1 // pred_check_branch
      %51 = sbr.rel (0) target = $region17
    $region16: #{tpu_custom_call.1} parent=1 // pred_region
      %52 = dma.done [#allocation4], 128
    $region17: #{tpu_custom_call.1} parent=1 // pred_fallthru
      _
    %53 = vsyncpa [#allocation3], 1
    %54 = vsyncpa [#allocation4], 1

</llo_original>
